<compile_context>
chip_gen: v6e
topology: v6e:2x2x1
jax: 0.10.0
libtpu: 0.0.40
codegen_flags: <defaults>
</compile_context>

<pallas_src>
import functools

import jax
import jax.numpy as jnp
from jax.experimental import pallas as pl
from jax.experimental.pallas import tpu as pltpu

EPS = 1e-5
_VMEM_LIMIT_BYTES = 32 * 1024 * 1024  # explicit scoped-VMEM limit; safe on v5e/v6e/v7x


def _choose_tm(dhw, c_in, c_out, tile_budget_bytes=8 * 1024 * 1024):
    """Largest lane tile whose double-buffered f32 in+out tiles fit the budget."""
    bytes_per_lane = 4 * 2 * (c_in + c_out)           # 2 buffers, f32, in + out
    cap = max(128, (tile_budget_bytes // bytes_per_lane) // 128 * 128)
    if dhw <= cap:
        return dhw                                    # full spatial extent, no tail
    return cap                                        # multiple of 128, tail masked


def _stats_kernel(x_ref, sum_ref, sq_ref, *, dhw, tm):
    """Pass 1: per-(batch, channel) sum / sum-of-squares of relu(x) over lane tiles."""
    j = pl.program_id(1)

    @pl.when(j == 0)
    def _():
        sum_ref[...] = jnp.zeros_like(sum_ref)
        sq_ref[...] = jnp.zeros_like(sq_ref)

    x = jnp.maximum(x_ref[...], 0.0)                  # ReLU precedes BN -> stats of relu(x)
    if dhw % tm != 0:                                 # mask the ragged tail tile
        lane = jax.lax.broadcasted_iota(jnp.int32, x.shape, 1)
        x = jnp.where(j * tm + lane < dhw, x, 0.0)
    sum_ref[...] += jnp.sum(x, axis=1, keepdims=True)
    sq_ref[...] += jnp.sum(x * x, axis=1, keepdims=True)


def _apply_kernel(x_ref, w_ref, b_ref, o_ref):
    """Pass 2: relu -> folded (BN + 1x1x1 conv) as a single channel matmul + bias."""
    y = jnp.maximum(x_ref[...], 0.0)
    # For large channel counts, casting y / w_ref to bf16 (keeping f32
    # accumulation) would hit the fast MXU path; kept f32 for exact parity.
    o_ref[...] = (jnp.dot(w_ref[...], y, preferred_element_type=jnp.float32)
                  + b_ref[...]).astype(o_ref.dtype)


@jax.jit
def bottleneck_forward(x, gamma, beta, w, b):
    """x: (N, C_in, D, H, W) f32 -> (N, C_out, D, H, W) f32."""
    n, c_in, d, h, wd = x.shape
    c_out = w.shape[0]
    dhw = d * h * wd
    m_total = float(n * dhw)
    tm = _choose_tm(dhw, c_in, c_out)
    jt = pl.cdiv(dhw, tm)

    x3 = x.reshape(n, c_in, dhw)                      # free collapse of trailing dims
    w2 = w.reshape(c_out, c_in).astype(jnp.float32)

    cp_stats = pltpu.CompilerParams(
        dimension_semantics=("parallel", "arbitrary"),
        vmem_limit_bytes=_VMEM_LIMIT_BYTES)
    cp_apply = pltpu.CompilerParams(
        dimension_semantics=("parallel", "parallel"),
        vmem_limit_bytes=_VMEM_LIMIT_BYTES)

    # ---- Pass 1: per-batch partial BN statistics of relu(x) ----
    psum, psq = pl.pallas_call(
        functools.partial(_stats_kernel, dhw=dhw, tm=tm),
        out_shape=(jax.ShapeDtypeStruct((n, c_in, 1), jnp.float32),
                   jax.ShapeDtypeStruct((n, c_in, 1), jnp.float32)),
        grid_spec=pltpu.PrefetchScalarGridSpec(
            num_scalar_prefetch=0,
            grid=(n, jt),
            in_specs=[pl.BlockSpec((None, c_in, tm), lambda i, j: (i, 0, j))],
            out_specs=[pl.BlockSpec((None, c_in, 1), lambda i, j: (i, 0, 0)),
                       pl.BlockSpec((None, c_in, 1), lambda i, j: (i, 0, 0))]),
        compiler_params=cp_stats,
    )(x3)

    # ---- Tiny combine + BN fold in plain JAX (c_out x c_in, negligible) ----
    mean = jnp.sum(psum, axis=0) / m_total                                   # (c_in, 1)
    var = jnp.maximum(jnp.sum(psq, axis=0) / m_total - mean * mean, 0.0)     # biased var
    s = gamma.reshape(c_in, 1).astype(jnp.float32) * jax.lax.rsqrt(var + EPS)
    w_fold = w2 * s.reshape(1, c_in)                                         # (c_out, c_in)
    b_fold = (b.reshape(c_out, 1).astype(jnp.float32)
              + jnp.dot(w2, beta.reshape(c_in, 1).astype(jnp.float32) - s * mean))

    # ---- Pass 2: relu -> folded conv (weights/bias stay VMEM-resident) ----
    out3 = pl.pallas_call(
        _apply_kernel,
        out_shape=jax.ShapeDtypeStruct((n, c_out, dhw), jnp.float32),
        grid_spec=pltpu.PrefetchScalarGridSpec(
            num_scalar_prefetch=0,
            grid=(n, jt),
            in_specs=[pl.BlockSpec((None, c_in, tm), lambda i, j: (i, 0, j)),
                      pl.BlockSpec((c_out, c_in), lambda i, j: (0, 0)),
                      pl.BlockSpec((c_out, 1), lambda i, j: (0, 0))],
            out_specs=pl.BlockSpec((None, c_out, tm), lambda i, j: (i, 0, j))),
        compiler_params=cp_apply,
    )(x3, w_fold, b_fold)

    return out3.reshape(n, c_out, d, h, wd)           # free expand of trailing dim


def _reference(x, gamma, beta, w, b):
    """Pure-JAX reference of the same forward (training-mode BN)."""
    xr = jnp.maximum(x, 0.0)
    mean = jnp.mean(xr, axis=(0, 2, 3, 4), keepdims=True)
    var = jnp.mean((xr - mean) ** 2, axis=(0, 2, 3, 4), keepdims=True)
    xn = (xr - mean) / jnp.sqrt(var + EPS)
    y = xn * gamma.reshape(1, -1, 1, 1, 1) + beta.reshape(1, -1, 1, 1, 1)
    out = jnp.einsum("oc,ncdhw->nodhw", w.reshape(w.shape[0], w.shape[1]), y)
    return out + b.reshape(1, -1, 1, 1, 1)


if __name__ == "__main__":
    key = jax.random.PRNGKey(0)
    k_x, k_g, k_b, k_w, k_c = jax.random.split(key, 5)

    # Small shapes consistent with a 3-D bottleneck block.
    N, C_IN, C_OUT, D, H, W = 2, 4, 8, 8, 8, 8

    x = jax.random.normal(k_x, (N, C_IN, D, H, W), dtype=jnp.float32)
    gamma = 1.0 + 0.1 * jax.random.normal(k_g, (C_IN,), dtype=jnp.float32)
    beta = 0.1 * jax.random.normal(k_b, (C_IN,), dtype=jnp.float32)
    w = 0.5 * jax.random.normal(k_w, (C_OUT, C_IN, 1, 1, 1), dtype=jnp.float32)
    b = 0.1 * jax.random.normal(k_c, (C_OUT,), dtype=jnp.float32)

    out = bottleneck_forward(x, gamma, beta, w, b)
    out = jax.block_until_ready(out)

    ref = _reference(x, gamma, beta, w, b)
    assert out.shape == (N, C_OUT, D, H, W)
    assert jnp.allclose(out, ref, atol=1e-4, rtol=1e-4), "Pallas kernel mismatch vs reference"

    print("KERNEL_OK")
</pallas_src>

<mosaic_0001>
module attributes {stable_mosaic.version = 11 : i64} {
  func.func @_apply_kernel(%arg0: i32, %arg1: i32, %arg2: memref<1x4x512xf32, #tpu.memory_space<vmem>>, %arg3: memref<8x4xf32, #tpu.memory_space<vmem>>, %arg4: memref<8x1xf32, #tpu.memory_space<vmem>>, %arg5: memref<1x8x512xf32, #tpu.memory_space<vmem>>) attributes {dimension_semantics = [#tpu.dimension_semantics<parallel>, #tpu.dimension_semantics<parallel>], iteration_bounds = array<i64: 2, 1>, scalar_prefetch = 0 : i64, scratch_operands = 0 : i64, tpu.core_type = #tpu.core_type<tc>, window_params = [{transform_indices = @transform_0, window_bounds = array<i64: 1, 4, 512>}, {pipeline_mode = #tpu.pipeline_mode<synchronous>, transform_indices = @transform_1, window_bounds = array<i64: 8, 4>}, {pipeline_mode = #tpu.pipeline_mode<synchronous>, transform_indices = @transform_2, window_bounds = array<i64: 8, 1>}, {transform_indices = @transform_3, window_bounds = array<i64: 1, 8, 512>}]} {
    %c0 = arith.constant 0 : index
    %c0_0 = arith.constant 0 : index
    %c0_1 = arith.constant 0 : index
    %0 = vector.load %arg2[%c0, %c0_0, %c0_1] : memref<1x4x512xf32, #tpu.memory_space<vmem>>, vector<1x4x512xf32>
    %1 = vector.shape_cast %0 : vector<1x4x512xf32> to vector<4x512xf32>
    %cst = arith.constant 0.000000e+00 : f32
    %2 = vector.broadcast %cst : f32 to vector<4x512xf32>
    %3 = arith.maximumf %1, %2 : vector<4x512xf32>
    %c0_2 = arith.constant 0 : index
    %c0_3 = arith.constant 0 : index
    %4 = vector.load %arg3[%c0_2, %c0_3] : memref<8x4xf32, #tpu.memory_space<vmem>>, vector<8x4xf32>
    %cst_4 = arith.constant dense<0.000000e+00> : vector<8x512xf32>
    %5 = tpu.matmul %4, %3, %cst_4 {dimension_numbers = #tpu.dot_dimension_numbers<[1], [0], [0], [1], [0, 0, 1, 1], [], []>} : vector<8x4xf32>, vector<4x512xf32>, vector<8x512xf32> -> vector<8x512xf32>
    %c0_5 = arith.constant 0 : index
    %c0_6 = arith.constant 0 : index
    %6 = vector.load %arg4[%c0_5, %c0_6] : memref<8x1xf32, #tpu.memory_space<vmem>>, vector<8x1xf32>
    %7 = vector.broadcast %6 : vector<8x1xf32> to vector<8x512xf32>
    %8 = arith.addf %5, %7 : vector<8x512xf32>
    %c0_7 = arith.constant 0 : index
    %c0_8 = arith.constant 0 : index
    %c0_9 = arith.constant 0 : index
    %9 = vector.load %arg5[%c0_7, %c0_8, %c0_9] : memref<1x8x512xf32, #tpu.memory_space<vmem>>, vector<1x8x512xf32>
    %10 = vector.shape_cast %9 : vector<1x8x512xf32> to vector<8x512xf32>
    %11 = vector.shape_cast %8 : vector<8x512xf32> to vector<1x8x512xf32>
    tpu.vector_store %arg5[%c0_7, %c0_8, %c0_9], %11 {strides = array<i32>} : memref<1x8x512xf32, #tpu.memory_space<vmem>>, vector<1x8x512xf32>,
    return
  }
  func.func @transform_0(%arg0: i32, %arg1: i32) -> (i32, i32, i32) {
    %c0_i32 = arith.constant 0 : i32
    %c0_i32_0 = arith.constant 0 : i32
    return %arg0, %c0_i32, %arg1 : i32, i32, i32
  }
  func.func @transform_1(%arg0: i32, %arg1: i32) -> (i32, i32) {
    %c0_i32 = arith.constant 0 : i32
    %c0_i32_0 = arith.constant 0 : i32
    %c0_i32_1 = arith.constant 0 : i32
    return %c0_i32, %c0_i32_0 : i32, i32
  }
  func.func @transform_2(%arg0: i32, %arg1: i32) -> (i32, i32) {
    %c0_i32 = arith.constant 0 : i32
    %c0_i32_0 = arith.constant 0 : i32
    %c0_i32_1 = arith.constant 0 : i32
    return %c0_i32, %c0_i32_0 : i32, i32
  }
  func.func @transform_3(%arg0: i32, %arg1: i32) -> (i32, i32, i32) {
    %c0_i32 = arith.constant 0 : i32
    %c0_i32_0 = arith.constant 0 : i32
    return %arg0, %c0_i32, %arg1 : i32, i32, i32
  }
}

module attributes {stable_mosaic.version = 11 : i64} {
  func.func @_stats_kernel(%arg0: i32, %arg1: i32, %arg2: memref<1x4x512xf32, #tpu.memory_space<vmem>>, %arg3: memref<1x4x1xf32, #tpu.memory_space<vmem>>, %arg4: memref<1x4x1xf32, #tpu.memory_space<vmem>>) attributes {dimension_semantics = [#tpu.dimension_semantics<parallel>, #tpu.dimension_semantics<arbitrary>], iteration_bounds = array<i64: 2, 1>, scalar_prefetch = 0 : i64, scratch_operands = 0 : i64, tpu.core_type = #tpu.core_type<tc>, window_params = [{transform_indices = @transform_0, window_bounds = array<i64: 1, 4, 512>}, {transform_indices = @transform_1, window_bounds = array<i64: 1, 4, 1>}, {transform_indices = @transform_2, window_bounds = array<i64: 1, 4, 1>}]} {
    %c0_i32 = arith.constant 0 : i32
    %0 = arith.cmpi eq, %arg1, %c0_i32 : i32
    %1 = arith.extui %0 : i1 to i32
    %c0_i32_0 = arith.constant 0 : i32
    %2 = arith.cmpi ne, %1, %c0_i32_0 : i32
    scf.if %2 {
      %cst_17 = arith.constant 0.000000e+00 : f32
      %24 = vector.broadcast %cst_17 : f32 to vector<4x1xf32>
      %c0_18 = arith.constant 0 : index
      %c0_19 = arith.constant 0 : index
      %c0_20 = arith.constant 0 : index
      %25 = vector.load %arg3[%c0_18, %c0_19, %c0_20] : memref<1x4x1xf32, #tpu.memory_space<vmem>>, vector<1x4x1xf32>
      %26 = vector.shape_cast %25 : vector<1x4x1xf32> to vector<4x1xf32>
      %27 = vector.shape_cast %24 : vector<4x1xf32> to vector<1x4x1xf32>
      tpu.vector_store %arg3[%c0_18, %c0_19, %c0_20], %27 {strides = array<i32>} : memref<1x4x1xf32, #tpu.memory_space<vmem>>, vector<1x4x1xf32>,
      %cst_21 = arith.constant 0.000000e+00 : f32
      %28 = vector.broadcast %cst_21 : f32 to vector<4x1xf32>
      %c0_22 = arith.constant 0 : index
      %c0_23 = arith.constant 0 : index
      %c0_24 = arith.constant 0 : index
      %29 = vector.load %arg4[%c0_22, %c0_23, %c0_24] : memref<1x4x1xf32, #tpu.memory_space<vmem>>, vector<1x4x1xf32>
      %30 = vector.shape_cast %29 : vector<1x4x1xf32> to vector<4x1xf32>
      %31 = vector.shape_cast %28 : vector<4x1xf32> to vector<1x4x1xf32>
      tpu.vector_store %arg4[%c0_22, %c0_23, %c0_24], %31 {strides = array<i32>} : memref<1x4x1xf32, #tpu.memory_space<vmem>>, vector<1x4x1xf32>,
    } else {
    }
    %c0 = arith.constant 0 : index
    %c0_1 = arith.constant 0 : index
    %c0_2 = arith.constant 0 : index
    %3 = vector.load %arg2[%c0, %c0_1, %c0_2] : memref<1x4x512xf32, #tpu.memory_space<vmem>>, vector<1x4x512xf32>
    %4 = vector.shape_cast %3 : vector<1x4x512xf32> to vector<4x512xf32>
    %cst = arith.constant 0.000000e+00 : f32
    %5 = vector.broadcast %cst : f32 to vector<4x512xf32>
    %6 = arith.maximumf %4, %5 : vector<4x512xf32>
    %c0_3 = arith.constant 0 : index
    %c0_4 = arith.constant 0 : index
    %c0_5 = arith.constant 0 : index
    %7 = vector.load %arg3[%c0_3, %c0_4, %c0_5] : memref<1x4x1xf32, #tpu.memory_space<vmem>>, vector<1x4x1xf32>
    %8 = vector.shape_cast %7 : vector<1x4x1xf32> to vector<4x1xf32>
    %cst_6 = arith.constant dense<0.000000e+00> : vector<4xf32>
    %9 = vector.multi_reduction <add>, %6, %cst_6 [1] : vector<4x512xf32> to vector<4xf32>
    %10 = vector.shape_cast %9 : vector<4xf32> to vector<4x1xf32>
    %11 = arith.addf %8, %10 : vector<4x1xf32>
    %c0_7 = arith.constant 0 : index
    %c0_8 = arith.constant 0 : index
    %c0_9 = arith.constant 0 : index
    %12 = vector.load %arg3[%c0_7, %c0_8, %c0_9] : memref<1x4x1xf32, #tpu.memory_space<vmem>>, vector<1x4x1xf32>
    %13 = vector.shape_cast %12 : vector<1x4x1xf32> to vector<4x1xf32>
    %14 = vector.shape_cast %11 : vector<4x1xf32> to vector<1x4x1xf32>
    tpu.vector_store %arg3[%c0_7, %c0_8, %c0_9], %14 {strides = array<i32>} : memref<1x4x1xf32, #tpu.memory_space<vmem>>, vector<1x4x1xf32>,
    %c0_10 = arith.constant 0 : index
    %c0_11 = arith.constant 0 : index
    %c0_12 = arith.constant 0 : index
    %15 = vector.load %arg4[%c0_10, %c0_11, %c0_12] : memref<1x4x1xf32, #tpu.memory_space<vmem>>, vector<1x4x1xf32>
    %16 = vector.shape_cast %15 : vector<1x4x1xf32> to vector<4x1xf32>
    %17 = arith.mulf %6, %6 : vector<4x512xf32>
    %cst_13 = arith.constant dense<0.000000e+00> : vector<4xf32>
    %18 = vector.multi_reduction <add>, %17, %cst_13 [1] : vector<4x512xf32> to vector<4xf32>
    %19 = vector.shape_cast %18 : vector<4xf32> to vector<4x1xf32>
    %20 = arith.addf %16, %19 : vector<4x1xf32>
    %c0_14 = arith.constant 0 : index
    %c0_15 = arith.constant 0 : index
    %c0_16 = arith.constant 0 : index
    %21 = vector.load %arg4[%c0_14, %c0_15, %c0_16] : memref<1x4x1xf32, #tpu.memory_space<vmem>>, vector<1x4x1xf32>
    %22 = vector.shape_cast %21 : vector<1x4x1xf32> to vector<4x1xf32>
    %23 = vector.shape_cast %20 : vector<4x1xf32> to vector<1x4x1xf32>
    tpu.vector_store %arg4[%c0_14, %c0_15, %c0_16], %23 {strides = array<i32>} : memref<1x4x1xf32, #tpu.memory_space<vmem>>, vector<1x4x1xf32>,
    return
  }
  func.func @transform_0(%arg0: i32, %arg1: i32) -> (i32, i32, i32) {
    %c0_i32 = arith.constant 0 : i32
    %c0_i32_0 = arith.constant 0 : i32
    return %arg0, %c0_i32, %arg1 : i32, i32, i32
  }
  func.func @transform_1(%arg0: i32, %arg1: i32) -> (i32, i32, i32) {
    %c0_i32 = arith.constant 0 : i32
    %c0_i32_0 = arith.constant 0 : i32
    %c0_i32_1 = arith.constant 0 : i32
    return %arg0, %c0_i32, %c0_i32_0 : i32, i32, i32
  }
  func.func @transform_2(%arg0: i32, %arg1: i32) -> (i32, i32, i32) {
    %c0_i32 = arith.constant 0 : i32
    %c0_i32_0 = arith.constant 0 : i32
    %c0_i32_1 = arith.constant 0 : i32
    return %arg0, %c0_i32, %c0_i32_0 : i32, i32, i32
  }
}

</mosaic_0001>

<llo_original>
// kernel: bottleneck_forward.2
$region0: #{bottleneck_forward.2}
  #allocation0 [shape = 'u32[]', space=smem, size = 0x4, offset = 0x4, fixed_abs, tag = 'smem constant byte address 0x4 - core index']
  #allocation1 [shape = 'u32[144,128]{1,0:T(1,128)}', space=vmem, size = 0x12000, scoped, tag = 'internal scratch']
  %s0 = inlined_call_operand.vmem [shape: f32[2,4,512], index: 0, kind: input, shape index: {}]
  %s1 = inlined_call_operand.vmem [shape: f32[2,4,1], index: 1, kind: output, shape index: {0}]
  %s2 = inlined_call_operand.vmem [shape: f32[2,4,1], index: 2, kind: output, shape index: {1}]
  %3 = xla_tuple %s1, %s2
  %s4 = sld [smem:[#allocation0]]
  $region49: #{bottleneck_forward.2} parent=0
    _
  %s6 = ssub.s32 1, %s4
  %s7 = scalar_select 0, %s6, %s4
  loop: start=0, step=1, limit=4
  $region2: #{bottleneck_forward.2} parent=0 // loop_pre_header
    _
  $region3: #{bottleneck_forward.2} parent=0 // loop_header
    %s9 = sphi 0, %s13
    %p10 = scmp.ge.s32.totalorder %s9, 4
    %s16 = sphi 0, %s28
    %s17 = sphi 0, %s24
    %s18 = sphi 0, %s16
    %s19 = sphi 0, %s17
    %s20 = sphi 0, %s18
    %s21 = sphi 0, %s19
    %s33 = sphi 0, %s35
    %s36 = sphi 0, %s33
    %s37 = sphi 0, %s36
    %s53 = sphi 0, %s37
    %s59 = sphi 0, %s61
    %s62 = sphi 0, %s59
    %s63 = sphi 0, %s62
    %s79 = sphi 0, %s63
    %s85 = sphi 0, %s87
    %s88 = sphi 0, %s85
    %s89 = sphi 0, %s88
    %s105 = sphi 0, %s89
  $region4: #{bottleneck_forward.2} parent=0 // loop_header_branch
    %12 = sbr.rel (%p10) target = $region8
  $region5: #{bottleneck_forward.2} parent=0 // loop_body
    %s14 = ssub.s32 %s9, 1
    %s15 = ssub.s32 %s9, 2
    %s22 = sadd.s32 1, %s17
    %p23 = scmp.ge.s32.totalorder %s22, 1
    %s24 = scalar_select %p23, 0, %s22
    %s25 = sadd.s32 1, %s16
    %s26 = scalar_select %p23, %s25, %s16
    %p27 = scmp.ge.s32.totalorder %s26, 2
    %s28 = scalar_select %p27, 0, %s26
    %s29 = ssub.s32 %s16, %s28
    %s30 = ssub.s32 %s17, %s24
    %s31 = sor.u32 %s29, %s30
    %p32 = scmp.eq.s32.totalorder %s31, 0
    %s34 = sadd.s32 %s33, 1
    %s35 = scalar_select %p32, %s33, %s34
    %p38 = pneg %p32
    %p39 = scmp.eq.s32.totalorder %s9, 1
    %p40 = por %p38, %p39
    %p41 = scmp.ne.s32.totalorder %s33, %s36
    %p42 = scmp.eq.s32.totalorder %s9, 0
    %p43 = por %p41, %p42
    %p44 = scmp.ne.s32.totalorder %s33, %s36
    %p45 = scmp.eq.s32.totalorder %s14, 1
    %p46 = por %p44, %p45
    %p47 = scmp.ne.s32.totalorder %s36, %s37
    %p48 = scmp.eq.s32.totalorder %s14, 0
    %p49 = por %p47, %p48
    %p50 = scmp.ne.s32.totalorder %s36, %s37
    %p51 = scmp.eq.s32.totalorder %s15, 1
    %p52 = por %p50, %p51
    %p54 = scmp.ne.s32.totalorder %s37, %s53
    %p55 = scmp.eq.s32.totalorder %s15, 0
    %p56 = por %p54, %p55
    %s57 = ssub.s32 %s16, %s28
    %p58 = scmp.eq.s32.totalorder %s57, 0
    %s60 = sadd.s32 %s59, 1
    %s61 = scalar_select %p58, %s59, %s60
    %p64 = pneg %p58
    %p65 = scmp.eq.s32.totalorder %s9, 1
    %p66 = por %p64, %p65
    %p67 = scmp.ne.s32.totalorder %s59, %s62
    %p68 = scmp.eq.s32.totalorder %s9, 0
    %p69 = por %p67, %p68
    %p70 = scmp.ne.s32.totalorder %s59, %s62
    %p71 = scmp.eq.s32.totalorder %s14, 1
    %p72 = por %p70, %p71
    %p73 = scmp.ne.s32.totalorder %s62, %s63
    %p74 = scmp.eq.s32.totalorder %s14, 0
    %p75 = por %p73, %p74
    %p76 = scmp.ne.s32.totalorder %s62, %s63
    %p77 = scmp.eq.s32.totalorder %s15, 1
    %p78 = por %p76, %p77
    %p80 = scmp.ne.s32.totalorder %s63, %s79
    %p81 = scmp.eq.s32.totalorder %s15, 0
    %p82 = por %p80, %p81
    %s83 = ssub.s32 %s16, %s28
    %p84 = scmp.eq.s32.totalorder %s83, 0
    %s86 = sadd.s32 %s85, 1
    %s87 = scalar_select %p84, %s85, %s86
    %p90 = pneg %p84
    %p91 = scmp.eq.s32.totalorder %s9, 1
    %p92 = por %p90, %p91
    %p93 = scmp.ne.s32.totalorder %s85, %s88
    %p94 = scmp.eq.s32.totalorder %s9, 0
    %p95 = por %p93, %p94
    %p96 = scmp.ne.s32.totalorder %s85, %s88
    %p97 = scmp.eq.s32.totalorder %s14, 1
    %p98 = por %p96, %p97
    %p99 = scmp.ne.s32.totalorder %s88, %s89
    %p100 = scmp.eq.s32.totalorder %s14, 0
    %p101 = por %p99, %p100
    %p102 = scmp.ne.s32.totalorder %s88, %s89
    %p103 = scmp.eq.s32.totalorder %s15, 1
    %p104 = por %p102, %p103
    %p106 = scmp.ne.s32.totalorder %s89, %s105
    %p107 = scmp.eq.s32.totalorder %s15, 0
    %p108 = por %p106, %p107
    %p109 = scmp.le.s32.totalorder 1, %s9
    %p110 = scmp.lt.s32.totalorder %s9, 3
    %p111 = pnand %p109, %p110
    %p112 = pneg %p111
    // Predicated region
    $region9: #{bottleneck_forward.2} parent=5 // pred_check
      _
    $region10: #{bottleneck_forward.2} parent=5 // pred_check_branch
      %114 = sbr.rel (%p111) target = $region12
    $region11: #{bottleneck_forward.2} parent=5 // pred_region
      %s115 = ssub.s32 %s9, 1
    $region12: #{bottleneck_forward.2} parent=5 // pred_fallthru
      _
    %p116 = scmp.lt.s32.totalorder %s9, 2
    // Predicated region
    $region13: #{bottleneck_forward.2} parent=5 // pred_check
      %p117 = pneg %p116
    $region14: #{bottleneck_forward.2} parent=5 // pred_check_branch
      %119 = sbr.rel (%p117) target = $region16
    $region15: #{bottleneck_forward.2} parent=5 // pred_region
      // Predicated region
      $region17: #{bottleneck_forward.2} parent=15 // pred_check
        %p120 = pneg %p43
      $region18: #{bottleneck_forward.2} parent=15 // pred_check_branch
        %122 = sbr.rel (%p120) target = $region20
      $region19: #{bottleneck_forward.2} parent=15 // pred_region
        %s123 = smul.u32 4, %s17
        %p124 = scmp.lt.s32.totalorder %s16, 1
        %s125 = scalar_select %p124, %s16, 1
        %p126 = scmp.lt.s32.totalorder %s123, 3
        %s127 = scalar_select %p126, %s123, 3
        %s128 = smul.addr %s125, 4
        %s129 = sadd.s32 %s127, %s128
        %s130 = smul.addr %s129, 4
        %s131 = scalar_lea.vmem %s0, %s130
        %s132 = smul.u32 4, %s17
      $region20: #{bottleneck_forward.2} parent=15 // pred_fallthru
        _
    $region16: #{bottleneck_forward.2} parent=5 // pred_fallthru
      _
    %p133 = scmp.le.s32.totalorder 1, %s9
    %p134 = scmp.lt.s32.totalorder %s9, 3
    %p135 = pnand %p133, %p134
    %p136 = pneg %p135
    // Predicated region
    $region21: #{bottleneck_forward.2} parent=5 // pred_check
      _
    $region22: #{bottleneck_forward.2} parent=5 // pred_check_branch
      %138 = sbr.rel (%p135) target = $region24
    $region23: #{bottleneck_forward.2} parent=5 // pred_region
      %s139 = ssub.s32 %s9, 1
      %s140 = smul.u32 4, %s19
      %p141 = scmp.lt.s32.totalorder %s18, 1
      %s142 = scalar_select %p141, %s18, 1
      %p143 = scmp.lt.s32.totalorder %s140, 3
      %s144 = scalar_select %p143, %s140, 3
      %s145 = smul.addr %s142, 4
      %s146 = sadd.s32 %s144, %s145
      %s147 = smul.addr %s146, 4
      %s148 = scalar_lea.vmem %s0, %s147
      %p149 = pneg %p49
      %p150 = pneg %p46
      %p151 = pneg %p75
      %p152 = pneg %p72
      %p153 = scmp.lt.s32.totalorder %s18, 1
      %s154 = scalar_select %p153, %s18, 1
      %s155 = smul.addr %s154, 4
      %s156 = scalar_lea.vmem %s1, %s155
      %p157 = pneg %p101
      %p158 = pneg %p98
      %p159 = scmp.lt.s32.totalorder %s18, 1
      %s160 = scalar_select %p159, %s18, 1
      %s161 = smul.addr %s160, 4
      %s162 = scalar_lea.vmem %s2, %s161
      %s163 = smul.u32 4, %s19
      %p164 = scmp.lt.s32.totalorder %s18, 1
      %s165 = scalar_select %p164, %s18, 1
      %p166 = scmp.lt.s32.totalorder %s163, 3
      %s167 = scalar_select %p166, %s163, 3
      %s168 = smul.addr %s165, 4
      %s169 = sadd.s32 %s167, %s168
      %s170 = smul.addr %s169, 4
      %s171 = scalar_lea.vmem %s0, %s170
      %s172 = smul.u32 4, %s19
      %p173 = scmp.lt.s32.totalorder %s18, 1
      %s174 = scalar_select %p173, %s18, 1
      %s175 = smul.addr %s174, 4
      %s176 = scalar_lea.vmem %s1, %s175
      %p177 = scmp.lt.s32.totalorder %s18, 1
      %s178 = scalar_select %p177, %s18, 1
      %s179 = smul.addr %s178, 4
      %s180 = scalar_lea.vmem %s2, %s179
      %p181 = scmp.eq.s32.totalorder %s19, 0
      // Predicated region
      $region25: #{bottleneck_forward.2} parent=23 // pred_check
        %p182 = pneg %p181
      $region26: #{bottleneck_forward.2} parent=23 // pred_check_branch
        %184 = sbr.rel (%p182) target = $region28
      $region27: #{bottleneck_forward.2} parent=23 // pred_region
        %vm185 = vcmask 3072
        %186 = vst.msk [vmem:[%s176] sm:$0xf] %vm185, 0.0
        %187 = vst.msk [vmem:[%s180] sm:$0xf] %vm185, 0.0
      $region28: #{bottleneck_forward.2} parent=23 // pred_fallthru
        _
      %v188 = vld [vmem:[%s171] sm:$0xff]
      %v189 = vld [vmem:[%s171 + $0x8] sm:$0xff]
      %v190 = vmax.f32 %v188, 0.0
      %v191 = vmax.f32 %v189, 0.0
      %v192 = vld [vmem:[%s176] sm:$0xf]
      %v195 = vcombine.high %v190, %v190
      %v196 = vcombine.high %v191, %v191
      %vm199 = vcmask 1043456
      %v200 = vsel %vm199, %v190, 0.0
      %v201 = vsel %vm199, %v195, 0.0
      %v202 = vadd.f32 %v200, %v201
      %v203 = vsel %vm199, %v191, 0.0
      %v204 = vadd.f32 %v202, %v203
      %v205 = vsel %vm199, %v196, 0.0
      %v206 = vadd.f32 %v204, %v205
      %207 = vadd.xlane.f32.xlu0 %v206
      %v208 = vpop.xlane.xlu0 %207
      %v209 = vadd.f32 %v192, %v208
      %vm210 = vcmask 3072
      %211 = vst.msk [vmem:[%s176] sm:$0xf] %vm210, %v209
      %v212 = vld [vmem:[%s180] sm:$0xf]
      %v213 = vmul.f32 %v190, %v190
      %v214 = vmul.f32 %v191, %v191
      %v217 = vcombine.high %v213, %v213
      %v218 = vcombine.high %v214, %v214
      %v221 = vsel %vm199, %v213, 0.0
      %v222 = vsel %vm199, %v217, 0.0
      %v223 = vadd.f32 %v221, %v222
      %v224 = vsel %vm199, %v214, 0.0
      %v225 = vadd.f32 %v223, %v224
      %v226 = vsel %vm199, %v218, 0.0
      %v227 = vadd.f32 %v225, %v226
      %228 = vadd.xlane.f32.xlu0 %v227
      %v229 = vpop.xlane.xlu0 %228
      %v230 = vadd.f32 %v212, %v229
      %231 = vst.msk [vmem:[%s180] sm:$0xf] %vm210, %v230
      %p232 = scmp.lt.s32.totalorder %s18, 1
      %s233 = scalar_select %p232, %s18, 1
      %s234 = smul.addr %s233, 4
      %s235 = scalar_lea.vmem %s1, %s234
      %p236 = scmp.lt.s32.totalorder %s18, 1
      %s237 = scalar_select %p236, %s18, 1
      %s238 = smul.addr %s237, 4
      %s239 = scalar_lea.vmem %s2, %s238
      // Predicated region
      $region29: #{bottleneck_forward.2} parent=23 // pred_check
        %p240 = pneg %p72
      $region30: #{bottleneck_forward.2} parent=23 // pred_check_branch
        %242 = sbr.rel (%p240) target = $region32
      $region31: #{bottleneck_forward.2} parent=23 // pred_region
        _
      $region32: #{bottleneck_forward.2} parent=23 // pred_fallthru
        _
      // Predicated region
      $region33: #{bottleneck_forward.2} parent=23 // pred_check
        %p243 = pneg %p98
      $region34: #{bottleneck_forward.2} parent=23 // pred_check_branch
        %245 = sbr.rel (%p243) target = $region36
      $region35: #{bottleneck_forward.2} parent=23 // pred_region
        _
      $region36: #{bottleneck_forward.2} parent=23 // pred_fallthru
        _
    $region24: #{bottleneck_forward.2} parent=5 // pred_fallthru
      _
    %p246 = scmp.le.s32.totalorder 2, %s9
    // Predicated region
    $region37: #{bottleneck_forward.2} parent=5 // pred_check
      %p247 = pneg %p246
    $region38: #{bottleneck_forward.2} parent=5 // pred_check_branch
      %249 = sbr.rel (%p247) target = $region40
    $region39: #{bottleneck_forward.2} parent=5 // pred_region
      %s250 = ssub.s32 %s9, 2
      // Predicated region
      $region41: #{bottleneck_forward.2} parent=39 // pred_check
        %p251 = pneg %p78
      $region42: #{bottleneck_forward.2} parent=39 // pred_check_branch
        %253 = sbr.rel (%p251) target = $region44
      $region43: #{bottleneck_forward.2} parent=39 // pred_region
        %p254 = scmp.lt.s32.totalorder %s20, 1
        %s255 = scalar_select %p254, %s20, 1
        %s256 = smul.addr %s255, 4
        %s257 = scalar_lea.vmem %s1, %s256
      $region44: #{bottleneck_forward.2} parent=39 // pred_fallthru
        _
      // Predicated region
      $region45: #{bottleneck_forward.2} parent=39 // pred_check
        %p258 = pneg %p104
      $region46: #{bottleneck_forward.2} parent=39 // pred_check_branch
        %260 = sbr.rel (%p258) target = $region48
      $region47: #{bottleneck_forward.2} parent=39 // pred_region
        %p261 = scmp.lt.s32.totalorder %s20, 1
        %s262 = scalar_select %p261, %s20, 1
        %s263 = smul.addr %s262, 4
        %s264 = scalar_lea.vmem %s2, %s263
      $region48: #{bottleneck_forward.2} parent=39 // pred_fallthru
        _
    $region40: #{bottleneck_forward.2} parent=5 // pred_fallthru
      _
  $region6: #{bottleneck_forward.2} parent=0 // loop_footer
    %s13 = sadd.s32 1, %s9
  $region7: #{bottleneck_forward.2} parent=0 // loop_footer_branch
    %8 = sbr.rel target = $region3
  $region8: #{bottleneck_forward.2} parent=0 // loop_exit
    _

// kernel: bottleneck_forward.3
$region0: #{bottleneck_forward.3}
  #allocation0 [shape = 'u32[]', space=smem, size = 0x4, offset = 0x4, fixed_abs, tag = 'smem constant byte address 0x4 - core index']
  #allocation1 [shape = 'u32[144,128]{1,0:T(1,128)}', space=vmem, size = 0x12000, scoped, tag = 'internal scratch']
  %s0 = inlined_call_operand.vmem [shape: f32[2,4,512], index: 0, kind: input, shape index: {}]
  %s1 = inlined_call_operand.vmem [shape: f32[8,4], index: 1, kind: input, shape index: {}]
  %s2 = inlined_call_operand.vmem [shape: f32[8,1], index: 2, kind: input, shape index: {}]
  %s3 = inlined_call_operand.vmem [shape: f32[2,8,512], index: 3, kind: output, shape index: {}]
  %s4 = sld [smem:[#allocation0]]
  $region45: #{bottleneck_forward.3} parent=0
    _
  %s6 = ssub.s32 1, %s4
  %s7 = scalar_select 0, %s6, %s4
  loop: start=0, step=1, limit=4
  $region2: #{bottleneck_forward.3} parent=0 // loop_pre_header
    _
  $region3: #{bottleneck_forward.3} parent=0 // loop_header
    %s9 = sphi 0, %s13
    %p10 = scmp.ge.s32.totalorder %s9, 4
    %s16 = sphi 0, %s28
    %s17 = sphi 0, %s24
    %s18 = sphi 0, %s16
    %s19 = sphi 0, %s17
    %s20 = sphi 0, %s18
    %s21 = sphi 0, %s19
    %s33 = sphi 0, %s35
    %s36 = sphi 0, %s33
    %s37 = sphi 0, %s36
    %s53 = sphi 0, %s37
    %s57 = sphi 0, %s57
    %s59 = sphi 0, %s57
    %s60 = sphi 0, %s59
    %s74 = sphi 0, %s60
    %s78 = sphi 0, %s78
    %s80 = sphi 0, %s78
    %s81 = sphi 0, %s80
    %s95 = sphi 0, %s81
    %s103 = sphi 0, %s105
    %s106 = sphi 0, %s103
    %s107 = sphi 0, %s106
    %s123 = sphi 0, %s107
  $region4: #{bottleneck_forward.3} parent=0 // loop_header_branch
    %12 = sbr.rel (%p10) target = $region8
  $region5: #{bottleneck_forward.3} parent=0 // loop_body
    %s14 = ssub.s32 %s9, 1
    %s15 = ssub.s32 %s9, 2
    %s22 = sadd.s32 1, %s17
    %p23 = scmp.ge.s32.totalorder %s22, 1
    %s24 = scalar_select %p23, 0, %s22
    %s25 = sadd.s32 1, %s16
    %s26 = scalar_select %p23, %s25, %s16
    %p27 = scmp.ge.s32.totalorder %s26, 2
    %s28 = scalar_select %p27, 0, %s26
    %s29 = ssub.s32 %s16, %s28
    %s30 = ssub.s32 %s17, %s24
    %s31 = sor.u32 %s29, %s30
    %p32 = scmp.eq.s32.totalorder %s31, 0
    %s34 = sadd.s32 %s33, 1
    %s35 = scalar_select %p32, %s33, %s34
    %p38 = pneg %p32
    %p39 = scmp.eq.s32.totalorder %s9, 1
    %p40 = por %p38, %p39
    %p41 = scmp.ne.s32.totalorder %s33, %s36
    %p42 = scmp.eq.s32.totalorder %s9, 0
    %p43 = por %p41, %p42
    %p44 = scmp.ne.s32.totalorder %s33, %s36
    %p45 = scmp.eq.s32.totalorder %s14, 1
    %p46 = por %p44, %p45
    %p47 = scmp.ne.s32.totalorder %s36, %s37
    %p48 = scmp.eq.s32.totalorder %s14, 0
    %p49 = por %p47, %p48
    %p50 = scmp.ne.s32.totalorder %s36, %s37
    %p51 = scmp.eq.s32.totalorder %s15, 1
    %p52 = por %p50, %p51
    %p54 = scmp.ne.s32.totalorder %s37, %s53
    %p55 = scmp.eq.s32.totalorder %s15, 0
    %p56 = por %p54, %p55
    %s58 = sadd.s32 %s57, 1
    %p61 = scmp.eq.s32.totalorder %s9, 1
    %p62 = scmp.ne.s32.totalorder %s57, %s59
    %p63 = scmp.eq.s32.totalorder %s9, 0
    %p64 = por %p62, %p63
    %p65 = scmp.ne.s32.totalorder %s57, %s59
    %p66 = scmp.eq.s32.totalorder %s14, 1
    %p67 = por %p65, %p66
    %p68 = scmp.ne.s32.totalorder %s59, %s60
    %p69 = scmp.eq.s32.totalorder %s14, 0
    %p70 = por %p68, %p69
    %p71 = scmp.ne.s32.totalorder %s59, %s60
    %p72 = scmp.eq.s32.totalorder %s15, 1
    %p73 = por %p71, %p72
    %p75 = scmp.ne.s32.totalorder %s60, %s74
    %p76 = scmp.eq.s32.totalorder %s15, 0
    %p77 = por %p75, %p76
    %s79 = sadd.s32 %s78, 1
    %p82 = scmp.eq.s32.totalorder %s9, 1
    %p83 = scmp.ne.s32.totalorder %s78, %s80
    %p84 = scmp.eq.s32.totalorder %s9, 0
    %p85 = por %p83, %p84
    %p86 = scmp.ne.s32.totalorder %s78, %s80
    %p87 = scmp.eq.s32.totalorder %s14, 1
    %p88 = por %p86, %p87
    %p89 = scmp.ne.s32.totalorder %s80, %s81
    %p90 = scmp.eq.s32.totalorder %s14, 0
    %p91 = por %p89, %p90
    %p92 = scmp.ne.s32.totalorder %s80, %s81
    %p93 = scmp.eq.s32.totalorder %s15, 1
    %p94 = por %p92, %p93
    %p96 = scmp.ne.s32.totalorder %s81, %s95
    %p97 = scmp.eq.s32.totalorder %s15, 0
    %p98 = por %p96, %p97
    %s99 = ssub.s32 %s16, %s28
    %s100 = ssub.s32 %s17, %s24
    %s101 = sor.u32 %s99, %s100
    %p102 = scmp.eq.s32.totalorder %s101, 0
    %s104 = sadd.s32 %s103, 1
    %s105 = scalar_select %p102, %s103, %s104
    %p108 = pneg %p102
    %p109 = scmp.eq.s32.totalorder %s9, 1
    %p110 = por %p108, %p109
    %p111 = scmp.ne.s32.totalorder %s103, %s106
    %p112 = scmp.eq.s32.totalorder %s9, 0
    %p113 = por %p111, %p112
    %p114 = scmp.ne.s32.totalorder %s103, %s106
    %p115 = scmp.eq.s32.totalorder %s14, 1
    %p116 = por %p114, %p115
    %p117 = scmp.ne.s32.totalorder %s106, %s107
    %p118 = scmp.eq.s32.totalorder %s14, 0
    %p119 = por %p117, %p118
    %p120 = scmp.ne.s32.totalorder %s106, %s107
    %p121 = scmp.eq.s32.totalorder %s15, 1
    %p122 = por %p120, %p121
    %p124 = scmp.ne.s32.totalorder %s107, %s123
    %p125 = scmp.eq.s32.totalorder %s15, 0
    %p126 = por %p124, %p125
    %p127 = scmp.le.s32.totalorder 1, %s9
    %p128 = scmp.lt.s32.totalorder %s9, 3
    %p129 = pnand %p127, %p128
    %p130 = pneg %p129
    // Predicated region
    $region9: #{bottleneck_forward.3} parent=5 // pred_check
      _
    $region10: #{bottleneck_forward.3} parent=5 // pred_check_branch
      %132 = sbr.rel (%p129) target = $region12
    $region11: #{bottleneck_forward.3} parent=5 // pred_region
      %s133 = ssub.s32 %s9, 1
      // Predicated region
      $region13: #{bottleneck_forward.3} parent=11 // pred_check
        %p134 = pneg %p70
      $region14: #{bottleneck_forward.3} parent=11 // pred_check_branch
        %136 = sbr.rel (%p134) target = $region16
      $region15: #{bottleneck_forward.3} parent=11 // pred_region
        _
      $region16: #{bottleneck_forward.3} parent=11 // pred_fallthru
        _
      // Predicated region
      $region17: #{bottleneck_forward.3} parent=11 // pred_check
        %p137 = pneg %p91
      $region18: #{bottleneck_forward.3} parent=11 // pred_check_branch
        %139 = sbr.rel (%p137) target = $region20
      $region19: #{bottleneck_forward.3} parent=11 // pred_region
        _
      $region20: #{bottleneck_forward.3} parent=11 // pred_fallthru
        _
    $region12: #{bottleneck_forward.3} parent=5 // pred_fallthru
      _
    %p140 = scmp.lt.s32.totalorder %s9, 2
    // Predicated region
    $region21: #{bottleneck_forward.3} parent=5 // pred_check
      %p141 = pneg %p140
    $region22: #{bottleneck_forward.3} parent=5 // pred_check_branch
      %143 = sbr.rel (%p141) target = $region24
    $region23: #{bottleneck_forward.3} parent=5 // pred_region
      // Predicated region
      $region25: #{bottleneck_forward.3} parent=23 // pred_check
        %p144 = pneg %p43
      $region26: #{bottleneck_forward.3} parent=23 // pred_check_branch
        %146 = sbr.rel (%p144) target = $region28
      $region27: #{bottleneck_forward.3} parent=23 // pred_region
        %s147 = smul.u32 4, %s17
        %p148 = scmp.lt.s32.totalorder %s16, 1
        %s149 = scalar_select %p148, %s16, 1
        %p150 = scmp.lt.s32.totalorder %s147, 3
        %s151 = scalar_select %p150, %s147, 3
        %s152 = smul.addr %s149, 4
        %s153 = sadd.s32 %s151, %s152
        %s154 = smul.addr %s153, 4
        %s155 = scalar_lea.vmem %s0, %s154
        %s156 = smul.u32 4, %s17
      $region28: #{bottleneck_forward.3} parent=23 // pred_fallthru
        _
    $region24: #{bottleneck_forward.3} parent=5 // pred_fallthru
      _
    %p157 = scmp.le.s32.totalorder 1, %s9
    %p158 = scmp.lt.s32.totalorder %s9, 3
    %p159 = pnand %p157, %p158
    %p160 = pneg %p159
    // Predicated region
    $region29: #{bottleneck_forward.3} parent=5 // pred_check
      _
    $region30: #{bottleneck_forward.3} parent=5 // pred_check_branch
      %162 = sbr.rel (%p159) target = $region32
    $region31: #{bottleneck_forward.3} parent=5 // pred_region
      %s163 = ssub.s32 %s9, 1
      %s164 = smul.u32 4, %s19
      %p165 = scmp.lt.s32.totalorder %s18, 1
      %s166 = scalar_select %p165, %s18, 1
      %p167 = scmp.lt.s32.totalorder %s164, 3
      %s168 = scalar_select %p167, %s164, 3
      %s169 = smul.addr %s166, 4
      %s170 = sadd.s32 %s168, %s169
      %s171 = smul.addr %s170, 4
      %s172 = scalar_lea.vmem %s0, %s171
      %p173 = pneg %p49
      %p174 = pneg %p46
      %p175 = pneg %p70
      %p176 = pneg %p67
      %p177 = pneg %p91
      %p178 = pneg %p88
      %p179 = pneg %p119
      %p180 = pneg %p116
      %s181 = smul.u32 4, %s19
      %p182 = scmp.lt.s32.totalorder %s18, 1
      %s183 = scalar_select %p182, %s18, 1
      %p184 = scmp.lt.s32.totalorder %s181, 3
      %s185 = scalar_select %p184, %s181, 3
      %s186 = smul.addr %s183, 4
      %s187 = sadd.s32 %s185, %s186
      %s188 = smul.addr %s187, 8
      %s189 = scalar_lea.vmem %s3, %s188
      %s190 = smul.u32 4, %s19
      %p191 = scmp.lt.s32.totalorder %s18, 1
      %s192 = scalar_select %p191, %s18, 1
      %p193 = scmp.lt.s32.totalorder %s190, 3
      %s194 = scalar_select %p193, %s190, 3
      %s195 = smul.addr %s192, 4
      %s196 = sadd.s32 %s194, %s195
      %s197 = smul.addr %s196, 4
      %s198 = scalar_lea.vmem %s0, %s197
      %s199 = smul.u32 4, %s19
      %s200 = smul.u32 4, %s19
      %p201 = scmp.lt.s32.totalorder %s18, 1
      %s202 = scalar_select %p201, %s18, 1
      %p203 = scmp.lt.s32.totalorder %s200, 3
      %s204 = scalar_select %p203, %s200, 3
      %s205 = smul.addr %s202, 4
      %s206 = sadd.s32 %s204, %s205
      %s207 = smul.addr %s206, 8
      %s208 = scalar_lea.vmem %s3, %s207
      %s209 = smul.u32 4, %s19
      %v210 = vld [vmem:[%s198] sm:$0xff]
      %v211 = vld [vmem:[%s198 + $0x8] sm:$0xff]
      %v212 = vmax.f32 %v210, 0.0
      %v213 = vmax.f32 %v211, 0.0
      %v214 = vld [vmem:[%s1] sm:$0xff]
      %v215 = vld [vmem:[%s2] sm:$0xff]
      %217 = vset.pattern.permute.xlu0 0
      %218 = vperm.xlu0 %217, %v215
      %v219 = vpop.permute.xlu0 %218
      %v223 = vcombine.high %v212, %v212
      %v224 = vcombine.high %v213, %v213
      %vm225 = vcmask 31744
      %v227 = vsel %vm225, %v214, 0
      %vm229 = vcmask 1043456
      %v230 = vsel %vm229, %v212, 0
      %v232 = vsel %vm229, %v223, 0
      %v234 = vsel %vm229, %v213, 0
      %v236 = vsel %vm229, %v224, 0
      %238 = vmatprep.subr.mxu0 0.0
      %239 = vmatpush1.msra.mxu0 0.0
      %240 = vmatprep.subr.mxu0 0.0
      %241 = vmatpush1.msra.mxu0 0.0
      %242 = vmatprep.subr.mxu0 0.0
      %243 = vmatpush1.msra.mxu0 0.0
      %244 = vmatprep.subr.mxu0 0.0
      %245 = vmatpush1.msra.mxu0 0.0
      %246 = vmatprep.subr.mxu0 0.0
      %247 = vmatpush1.msra.mxu0 0.0
      %248 = vmatprep.subr.mxu0 0.0
      %249 = vmatpush1.msra.mxu0 0.0
      %250 = vmatprep.subr.mxu0 0.0
      %251 = vmatpush1.msra.mxu0 0.0
      %252 = vmatprep.subr.mxu0 0.0
      %253 = vmatpush1.msra.mxu0 0.0
      %254 = vmatprep.subr.mxu0 0.0
      %255 = vmatpush1.msra.mxu0 0.0
      %256 = vmatprep.subr.mxu0 0.0
      %257 = vmatpush1.msra.mxu0 0.0
      %258 = vmatprep.subr.mxu0 0.0
      %259 = vmatpush1.msra.mxu0 0.0
      %260 = vmatprep.subr.mxu0 0.0
      %261 = vmatpush1.msra.mxu0 0.0
      %262 = vmatprep.subr.mxu0 0.0
      %263 = vmatpush1.msra.mxu0 0.0
      %264 = vmatprep.subr.mxu0 0.0
      %265 = vmatpush1.msra.mxu0 0.0
      %266 = vmatprep.subr.mxu0 0.0
      %267 = vmatpush1.msra.mxu0 0.0
      %268 = vmatprep.subr.mxu0 %v232
      %269 = vmatpush1.msra.mxu0 %v230
      %270 = vmatprep.subr.mxu0 0.0
      %271 = vmatpush2.msra.mxu0 0.0
      %272 = vmatprep.subr.mxu0 0.0
      %273 = vmatpush2.msra.mxu0 0.0
      %274 = vmatprep.subr.mxu0 0.0
      %275 = vmatpush2.msra.mxu0 0.0
      %276 = vmatprep.subr.mxu0 0.0
      %277 = vmatpush2.msra.mxu0 0.0
      %278 = vmatprep.subr.mxu0 0.0
      %279 = vmatpush2.msra.mxu0 0.0
      %280 = vmatprep.subr.mxu0 0.0
      %281 = vmatpush2.msra.mxu0 0.0
      %282 = vmatprep.subr.mxu0 0.0
      %283 = vmatpush2.msra.mxu0 0.0
      %284 = vmatprep.subr.mxu0 0.0
      %285 = vmatpush2.msra.mxu0 0.0
      %286 = vmatprep.subr.mxu0 0.0
      %287 = vmatpush2.msra.mxu0 0.0
      %288 = vmatprep.subr.mxu0 0.0
      %289 = vmatpush2.msra.mxu0 0.0
      %290 = vmatprep.subr.mxu0 0.0
      %291 = vmatpush2.msra.mxu0 0.0
      %292 = vmatprep.subr.mxu0 0.0
      %293 = vmatpush2.msra.mxu0 0.0
      %294 = vmatprep.subr.mxu0 0.0
      %295 = vmatpush2.msra.mxu0 0.0
      %296 = vmatprep.subr.mxu0 0.0
      %297 = vmatpush2.msra.mxu0 0.0
      %298 = vmatprep.subr.mxu0 0.0
      %299 = vmatpush2.msra.mxu0 0.0
      %300 = vmatprep.subr.mxu0 0.0
      %301 = vmatpush2.msra.mxu0 0.0
      %302 = vmatprep.mubr.f32.mxu0 0.0
      %303 = vmatmul.mubr.f32.gmra.mxu0 %v227
      %v304 = vpop.f32.mrf.mxu0
      %v305 = vadd.f32 %v219, %v304
      %v306 = vpop.f32.mrf.mxu0
      %v307 = vadd.f32 %v219, %v306
      %308 = vdwg.mxu0
      %309 = vmatprep.subr.mxu0 0.0
      %310 = vmatpush1.msra.mxu0 0.0
      %311 = vmatprep.subr.mxu0 0.0
      %312 = vmatpush1.msra.mxu0 0.0
      %313 = vmatprep.subr.mxu0 0.0
      %314 = vmatpush1.msra.mxu0 0.0
      %315 = vmatprep.subr.mxu0 0.0
      %316 = vmatpush1.msra.mxu0 0.0
      %317 = vmatprep.subr.mxu0 0.0
      %318 = vmatpush1.msra.mxu0 0.0
      %319 = vmatprep.subr.mxu0 0.0
      %320 = vmatpush1.msra.mxu0 0.0
      %321 = vmatprep.subr.mxu0 0.0
      %322 = vmatpush1.msra.mxu0 0.0
      %323 = vmatprep.subr.mxu0 0.0
      %324 = vmatpush1.msra.mxu0 0.0
      %325 = vmatprep.subr.mxu0 0.0
      %326 = vmatpush1.msra.mxu0 0.0
      %327 = vmatprep.subr.mxu0 0.0
      %328 = vmatpush1.msra.mxu0 0.0
      %329 = vmatprep.subr.mxu0 0.0
      %330 = vmatpush1.msra.mxu0 0.0
      %331 = vmatprep.subr.mxu0 0.0
      %332 = vmatpush1.msra.mxu0 0.0
      %333 = vmatprep.subr.mxu0 0.0
      %334 = vmatpush1.msra.mxu0 0.0
      %335 = vmatprep.subr.mxu0 0.0
      %336 = vmatpush1.msra.mxu0 0.0
      %337 = vmatprep.subr.mxu0 0.0
      %338 = vmatpush1.msra.mxu0 0.0
      %339 = vmatprep.subr.mxu0 %v236
      %340 = vmatpush1.msra.mxu0 %v234
      %341 = vmatprep.subr.mxu0 0.0
      %342 = vmatpush2.msra.mxu0 0.0
      %343 = vmatprep.subr.mxu0 0.0
      %344 = vmatpush2.msra.mxu0 0.0
      %345 = vmatprep.subr.mxu0 0.0
      %346 = vmatpush2.msra.mxu0 0.0
      %347 = vmatprep.subr.mxu0 0.0
      %348 = vmatpush2.msra.mxu0 0.0
      %349 = vmatprep.subr.mxu0 0.0
      %350 = vmatpush2.msra.mxu0 0.0
      %351 = vmatprep.subr.mxu0 0.0
      %352 = vmatpush2.msra.mxu0 0.0
      %353 = vmatprep.subr.mxu0 0.0
      %354 = vmatpush2.msra.mxu0 0.0
      %355 = vmatprep.subr.mxu0 0.0
      %356 = vmatpush2.msra.mxu0 0.0
      %357 = vmatprep.subr.mxu0 0.0
      %358 = vmatpush2.msra.mxu0 0.0
      %359 = vmatprep.subr.mxu0 0.0
      %360 = vmatpush2.msra.mxu0 0.0
      %361 = vmatprep.subr.mxu0 0.0
      %362 = vmatpush2.msra.mxu0 0.0
      %363 = vmatprep.subr.mxu0 0.0
      %364 = vmatpush2.msra.mxu0 0.0
      %365 = vmatprep.subr.mxu0 0.0
      %366 = vmatpush2.msra.mxu0 0.0
      %367 = vmatprep.subr.mxu0 0.0
      %368 = vmatpush2.msra.mxu0 0.0
      %369 = vmatprep.subr.mxu0 0.0
      %370 = vmatpush2.msra.mxu0 0.0
      %371 = vmatprep.subr.mxu0 0.0
      %372 = vmatpush2.msra.mxu0 0.0
      %373 = vmatprep.mubr.f32.mxu0 0.0
      %374 = vmatmul.mubr.f32.gmra.mxu0 %v227
      %v375 = vpop.f32.mrf.mxu0
      %v376 = vadd.f32 %v219, %v375
      %v377 = vpop.f32.mrf.mxu0
      %v378 = vadd.f32 %v219, %v377
      %379 = vdwg.mxu0
      %380 = vst [vmem:[%s208] sm:$0xff] %v305
      %381 = vst [vmem:[%s208 + $0x8] sm:$0xff] %v307
      %382 = vst [vmem:[%s208 + $0x10] sm:$0xff] %v376
      %383 = vst [vmem:[%s208 + $0x18] sm:$0xff] %v378
      %s384 = smul.u32 4, %s19
      %p385 = scmp.lt.s32.totalorder %s18, 1
      %s386 = scalar_select %p385, %s18, 1
      %p387 = scmp.lt.s32.totalorder %s384, 3
      %s388 = scalar_select %p387, %s384, 3
      %s389 = smul.addr %s386, 4
      %s390 = sadd.s32 %s388, %s389
      %s391 = smul.addr %s390, 8
      %s392 = scalar_lea.vmem %s3, %s391
      // Predicated region
      $region33: #{bottleneck_forward.3} parent=31 // pred_check
        %p393 = pneg %p116
      $region34: #{bottleneck_forward.3} parent=31 // pred_check_branch
        %395 = sbr.rel (%p393) target = $region36
      $region35: #{bottleneck_forward.3} parent=31 // pred_region
        %s396 = smul.u32 4, %s19
      $region36: #{bottleneck_forward.3} parent=31 // pred_fallthru
        _
    $region32: #{bottleneck_forward.3} parent=5 // pred_fallthru
      _
    %p397 = scmp.le.s32.totalorder 2, %s9
    // Predicated region
    $region37: #{bottleneck_forward.3} parent=5 // pred_check
      %p398 = pneg %p397
    $region38: #{bottleneck_forward.3} parent=5 // pred_check_branch
      %400 = sbr.rel (%p398) target = $region40
    $region39: #{bottleneck_forward.3} parent=5 // pred_region
      %s401 = ssub.s32 %s9, 2
      // Predicated region
      $region41: #{bottleneck_forward.3} parent=39 // pred_check
        %p402 = pneg %p122
      $region42: #{bottleneck_forward.3} parent=39 // pred_check_branch
        %404 = sbr.rel (%p402) target = $region44
      $region43: #{bottleneck_forward.3} parent=39 // pred_region
        %s405 = smul.u32 4, %s21
        %p406 = scmp.lt.s32.totalorder %s20, 1
        %s407 = scalar_select %p406, %s20, 1
        %p408 = scmp.lt.s32.totalorder %s405, 3
        %s409 = scalar_select %p408, %s405, 3
        %s410 = smul.addr %s407, 4
        %s411 = sadd.s32 %s409, %s410
        %s412 = smul.addr %s411, 8
        %s413 = scalar_lea.vmem %s3, %s412
      $region44: #{bottleneck_forward.3} parent=39 // pred_fallthru
        _
    $region40: #{bottleneck_forward.3} parent=5 // pred_fallthru
      _
  $region6: #{bottleneck_forward.3} parent=0 // loop_footer
    %s13 = sadd.s32 1, %s9
  $region7: #{bottleneck_forward.3} parent=0 // loop_footer_branch
    %8 = sbr.rel target = $region3
  $region8: #{bottleneck_forward.3} parent=0 // loop_exit
    _

</llo_original>
